<compile_context>
chip_gen: v5e
topology: v5e:2x2
jax: 0.10.0
libtpu: 0.0.40
codegen_flags: <defaults>
</compile_context>

<pallas_src>
import functools

import jax
import jax.numpy as jnp
from jax.experimental import pallas as pl
from jax.experimental.pallas import tpu as pltpu


def channel_attention_kernel(x_ref, w1t_ref, w2t_ref, o_ref, pool_ref, *, bb, inv_hw):
    # x_ref:    (BB, C, THW)  one batch block, one spatial tile (spatial on lanes)
    # w1t_ref:  (C, C_red)    first 1x1 conv weight, transposed (VMEM-resident)
    # w2t_ref:  (C_red, C)    second 1x1 conv weight, transposed (VMEM-resident)
    # o_ref:    (BB, C)       sigmoid(fc(avg) + fc(max)) for this batch block
    # pool_ref: (2*BB, C) f32 scratch; rows [0:BB] = running sum, [BB:2BB] = running max
    s = pl.program_id(1)
    c = pool_ref.shape[1]

    @pl.when(s == 0)
    def _init():
        pool_ref[:bb, :] = jnp.zeros((bb, c), jnp.float32)
        pool_ref[bb:, :] = jnp.full((bb, c), -jnp.inf, jnp.float32)

    # Streaming spatial reduction for this tile (VALU adds/maxes + one cross-lane
    # finish per tile).
    x = x_ref[...].astype(jnp.float32)                               # (BB, C, THW)
    pool_ref[:bb, :] += jnp.sum(x, axis=2)                           # running sum
    pool_ref[bb:, :] = jnp.maximum(pool_ref[bb:, :], jnp.max(x, axis=2))

    @pl.when(s == pl.num_programs(1) - 1)
    def _finalize():
        # Finish the mean, then run the shared FC chain ONCE on the stacked
        # [avg; max] operand (M = 2*BB) instead of two M=1 passes.
        pool_ref[:bb, :] = pool_ref[:bb, :] * inv_hw
        pooled = pool_ref[...]                                        # (2*BB, C)
        w1t = w1t_ref[...].astype(jnp.float32)                        # (C, C_red)
        w2t = w2t_ref[...].astype(jnp.float32)                        # (C_red, C)
        h = jnp.maximum(
            jnp.dot(pooled, w1t, preferred_element_type=jnp.float32), 0.0)
        y = jnp.dot(h, w2t, preferred_element_type=jnp.float32)       # (2*BB, C)
        logits = y[:bb, :] + y[bb:, :]                                # avg + max paths
        o_ref[...] = jax.nn.sigmoid(logits).astype(o_ref.dtype)


def _choose_spatial_tile(hw, bb, c, itemsize, budget_bytes=4 * 1024 * 1024):
    """Largest spatial tile that divides hw, is a multiple of 128 (or hw itself),
    and keeps one (bb, c, tile) block under the per-buffer VMEM budget."""
    if bb * c * hw * itemsize <= budget_bytes:
        return hw
    best = None
    t = 128
    while t <= hw:
        if hw % t == 0 and bb * c * t * itemsize <= budget_bytes:
            best = t
        t += 128
    return best if best is not None else hw


def channel_attention(x, w1, w2, *, batch_block=8):
    """x: (B, C, H, W). w1: (C_red, C) (= Conv2d(C, C_red, 1, bias=False).weight
    squeezed). w2: (C, C_red). Returns (B, C, 1, 1) like the PyTorch module."""
    B, C, H, W = x.shape
    HW = H * W
    C_red = w1.shape[0]

    BB = max(8, batch_block)
    B_pad = -(-B // BB) * BB
    x_flat = x.reshape(B, C, HW)
    if B_pad != B:
        # Zero-padded batch rows are computed and then dropped.
        x_flat = jnp.concatenate(
            [x_flat, jnp.zeros((B_pad - B, C, HW), x.dtype)], axis=0)

    THW = _choose_spatial_tile(HW, BB, C, x.dtype.itemsize)
    n_spatial = HW // THW

    w1t = jnp.transpose(w1)          # (C, C_red)
    w2t = jnp.transpose(w2)          # (C_red, C)

    kernel = functools.partial(
        channel_attention_kernel, bb=BB, inv_hw=1.0 / float(HW))

    # Size scoped VMEM to the actual working set (2 input buffers for x, resident
    # weights, output block, scratch) with generous headroom, capped at physical.
    x_block_bytes = BB * C * THW * x.dtype.itemsize
    small_bytes = 2 * C * C_red * 4 + BB * C * x.dtype.itemsize + 2 * BB * C * 4
    vmem_limit = int(min(128 * 1024 * 1024,
                         max(16 * 1024 * 1024,
                             4 * (2 * x_block_bytes + small_bytes))))

    out = pl.pallas_call(
        kernel,
        out_shape=jax.ShapeDtypeStruct((B_pad, C), x.dtype),
        grid_spec=pltpu.PrefetchScalarGridSpec(
            num_scalar_prefetch=0,
            grid=(B_pad // BB, n_spatial),
            in_specs=[
                pl.BlockSpec((BB, C, THW), lambda b, s: (b, 0, s)),
                pl.BlockSpec((C, C_red), lambda b, s: (0, 0)),
                pl.BlockSpec((C_red, C), lambda b, s: (0, 0)),
            ],
            out_specs=pl.BlockSpec((BB, C), lambda b, s: (b, 0)),
            scratch_shapes=[pltpu.VMEM((2 * BB, C), jnp.float32)],
        ),
        compiler_params=pltpu.CompilerParams(
            dimension_semantics=("parallel", "arbitrary"),
            vmem_limit_bytes=vmem_limit,
        ),
    )(x_flat, w1t, w2t)

    return out[:B].reshape(B, C, 1, 1)


def reference(x, w1, w2):
    # pure-JAX reference of the PyTorch forward
    avg = jnp.mean(x, axis=(2, 3))                         # (B, C)
    mx = jnp.max(x, axis=(2, 3))                           # (B, C)

    def fc(p):
        h = jnp.maximum(p @ w1.T, 0.0)                     # (B, C_red)
        return h @ w2.T                                    # (B, C)

    out = jax.nn.sigmoid(fc(avg) + fc(mx))
    return out[:, :, None, None]


if __name__ == "__main__":
    B, C, H, W = 2, 64, 16, 16
    reduction = 16
    C_red = C // reduction

    key = jax.random.PRNGKey(0)
    kx, k1, k2 = jax.random.split(key, 3)
    x = jax.random.normal(kx, (B, C, H, W), dtype=jnp.float32)
    # Conv2d(C, C_red, 1, bias=False).weight has shape (C_red, C, 1, 1) -> (C_red, C)
    w1 = jax.random.normal(k1, (C_red, C), dtype=jnp.float32) * 0.1
    w2 = jax.random.normal(k2, (C, C_red), dtype=jnp.float32) * 0.1

    out = channel_attention(x, w1, w2)
    out = jax.block_until_ready(out)

    ref = reference(x, w1, w2)
    assert out.shape == (B, C, 1, 1)
    assert jnp.allclose(out, ref, atol=1e-5, rtol=1e-5), "mismatch vs reference"
    print("KERNEL_OK")
</pallas_src>

<mosaic_0001>
module attributes {stable_mosaic.version = 11 : i64} {
  func.func @channel_attention_kernel(%arg0: i32, %arg1: i32, %arg2: memref<8x64x256xf32, #tpu.memory_space<vmem>>, %arg3: memref<64x4xf32, #tpu.memory_space<vmem>>, %arg4: memref<4x64xf32, #tpu.memory_space<vmem>>, %arg5: memref<8x64xf32, #tpu.memory_space<vmem>>, %arg6: memref<16x64xf32, #tpu.memory_space<vmem>>) attributes {dimension_semantics = [#tpu.dimension_semantics<parallel>, #tpu.dimension_semantics<arbitrary>], iteration_bounds = array<i64: 1, 1>, scalar_prefetch = 0 : i64, scratch_operands = 1 : i64, tpu.core_type = #tpu.core_type<tc>, window_params = [{transform_indices = @transform_0, window_bounds = array<i64: 8, 64, 256>}, {pipeline_mode = #tpu.pipeline_mode<synchronous>, transform_indices = @transform_1, window_bounds = array<i64: 64, 4>}, {pipeline_mode = #tpu.pipeline_mode<synchronous>, transform_indices = @transform_2, window_bounds = array<i64: 4, 64>}, {transform_indices = @transform_3, window_bounds = array<i64: 8, 64>}]} {
    %c0_i32 = arith.constant 0 : i32
    %0 = arith.cmpi eq, %arg1, %c0_i32 : i32
    %1 = arith.extui %0 : i1 to i32
    %c0_i32_0 = arith.constant 0 : i32
    %2 = arith.cmpi ne, %1, %c0_i32_0 : i32
    scf.if %2 {
      %cst_13 = arith.constant 0.000000e+00 : f32
      %15 = vector.broadcast %cst_13 : f32 to vector<8x64xf32>
      %c0_14 = arith.constant 0 : index
      %c0_15 = arith.constant 0 : index
      %16 = vector.load %arg6[%c0_14, %c0_15] : memref<16x64xf32, #tpu.memory_space<vmem>>, vector<8x64xf32>
      tpu.vector_store %arg6[%c0_14, %c0_15], %15 {strides = array<i32>} : memref<16x64xf32, #tpu.memory_space<vmem>>, vector<8x64xf32>,
      %cst_16 = arith.constant 0xFF800000 : f32
      %17 = vector.broadcast %cst_16 : f32 to vector<8x64xf32>
      %c8_17 = arith.constant 8 : index
      %c0_18 = arith.constant 0 : index
      %18 = vector.load %arg6[%c8_17, %c0_18] : memref<16x64xf32, #tpu.memory_space<vmem>>, vector<8x64xf32>
      tpu.vector_store %arg6[%c8_17, %c0_18], %17 {strides = array<i32>} : memref<16x64xf32, #tpu.memory_space<vmem>>, vector<8x64xf32>,
    } else {
    }
    %c0 = arith.constant 0 : index
    %c0_1 = arith.constant 0 : index
    %c0_2 = arith.constant 0 : index
    %3 = vector.load %arg2[%c0, %c0_1, %c0_2] : memref<8x64x256xf32, #tpu.memory_space<vmem>>, vector<8x64x256xf32>
    %c0_3 = arith.constant 0 : index
    %c0_4 = arith.constant 0 : index
    %4 = vector.load %arg6[%c0_3, %c0_4] : memref<16x64xf32, #tpu.memory_space<vmem>>, vector<8x64xf32>
    %cst = arith.constant dense<0.000000e+00> : vector<8x64xf32>
    %5 = vector.multi_reduction <add>, %3, %cst [2] : vector<8x64x256xf32> to vector<8x64xf32>
    %6 = arith.addf %4, %5 : vector<8x64xf32>
    %c0_5 = arith.constant 0 : index
    %c0_6 = arith.constant 0 : index
    %7 = vector.load %arg6[%c0_5, %c0_6] : memref<16x64xf32, #tpu.memory_space<vmem>>, vector<8x64xf32>
    tpu.vector_store %arg6[%c0_5, %c0_6], %6 {strides = array<i32>} : memref<16x64xf32, #tpu.memory_space<vmem>>, vector<8x64xf32>,
    %c8 = arith.constant 8 : index
    %c0_7 = arith.constant 0 : index
    %8 = vector.load %arg6[%c8, %c0_7] : memref<16x64xf32, #tpu.memory_space<vmem>>, vector<8x64xf32>
    %cst_8 = arith.constant dense<0xFF800000> : vector<8x64xf32>
    %9 = vector.multi_reduction <maximumf>, %3, %cst_8 [2] : vector<8x64x256xf32> to vector<8x64xf32>
    %10 = arith.maximumf %8, %9 : vector<8x64xf32>
    %c8_9 = arith.constant 8 : index
    %c0_10 = arith.constant 0 : index
    %11 = vector.load %arg6[%c8_9, %c0_10] : memref<16x64xf32, #tpu.memory_space<vmem>>, vector<8x64xf32>
    tpu.vector_store %arg6[%c8_9, %c0_10], %10 {strides = array<i32>} : memref<16x64xf32, #tpu.memory_space<vmem>>, vector<8x64xf32>,
    %c0_i32_11 = arith.constant 0 : i32
    %12 = arith.cmpi eq, %arg1, %c0_i32_11 : i32
    %13 = arith.extui %12 : i1 to i32
    %c0_i32_12 = arith.constant 0 : i32
    %14 = arith.cmpi ne, %13, %c0_i32_12 : i32
    scf.if %14 {
      %c0_13 = arith.constant 0 : index
      %c0_14 = arith.constant 0 : index
      %15 = vector.load %arg6[%c0_13, %c0_14] : memref<16x64xf32, #tpu.memory_space<vmem>>, vector<8x64xf32>
      %cst_15 = arith.constant 3.906250e-03 : f32
      %16 = vector.broadcast %cst_15 : f32 to vector<8x64xf32>
      %17 = arith.mulf %15, %16 : vector<8x64xf32>
      %c0_16 = arith.constant 0 : index
      %c0_17 = arith.constant 0 : index
      %18 = vector.load %arg6[%c0_16, %c0_17] : memref<16x64xf32, #tpu.memory_space<vmem>>, vector<8x64xf32>
      tpu.vector_store %arg6[%c0_16, %c0_17], %17 {strides = array<i32>} : memref<16x64xf32, #tpu.memory_space<vmem>>, vector<8x64xf32>,
      %c0_18 = arith.constant 0 : index
      %c0_19 = arith.constant 0 : index
      %19 = vector.load %arg6[%c0_18, %c0_19] : memref<16x64xf32, #tpu.memory_space<vmem>>, vector<16x64xf32>
      %c0_20 = arith.constant 0 : index
      %c0_21 = arith.constant 0 : index
      %20 = vector.load %arg3[%c0_20, %c0_21] : memref<64x4xf32, #tpu.memory_space<vmem>>, vector<64x4xf32>
      %c0_22 = arith.constant 0 : index
      %c0_23 = arith.constant 0 : index
      %21 = vector.load %arg4[%c0_22, %c0_23] : memref<4x64xf32, #tpu.memory_space<vmem>>, vector<4x64xf32>
      %cst_24 = arith.constant dense<0.000000e+00> : vector<16x4xf32>
      %22 = tpu.matmul %19, %20, %cst_24 {dimension_numbers = #tpu.dot_dimension_numbers<[1], [0], [0], [1], [0, 0, 1, 1], [], []>} : vector<16x64xf32>, vector<64x4xf32>, vector<16x4xf32> -> vector<16x4xf32>
      %cst_25 = arith.constant 0.000000e+00 : f32
      %23 = vector.broadcast %cst_25 : f32 to vector<16x4xf32>
      %24 = arith.maximumf %22, %23 : vector<16x4xf32>
      %cst_26 = arith.constant dense<0.000000e+00> : vector<16x64xf32>
      %25 = tpu.matmul %24, %21, %cst_26 {dimension_numbers = #tpu.dot_dimension_numbers<[1], [0], [0], [1], [0, 0, 1, 1], [], []>} : vector<16x4xf32>, vector<4x64xf32>, vector<16x64xf32> -> vector<16x64xf32>
      %26 = vector.extract_strided_slice %25 {offsets = [0, 0], sizes = [8, 64], strides = [1, 1]} : vector<16x64xf32> to vector<8x64xf32>
      %27 = vector.extract_strided_slice %25 {offsets = [8, 0], sizes = [8, 64], strides = [1, 1]} : vector<16x64xf32> to vector<8x64xf32>
      %28 = arith.addf %26, %27 : vector<8x64xf32>
      %29 = arith.negf %28 : vector<8x64xf32>
      %30 = math.exp %29 : vector<8x64xf32>
      %cst_27 = arith.constant 1.000000e+00 : f32
      %31 = vector.broadcast %cst_27 : f32 to vector<8x64xf32>
      %32 = arith.addf %31, %30 : vector<8x64xf32>
      %33 = arith.divf %31, %32 : vector<8x64xf32>
      %c0_28 = arith.constant 0 : index
      %c0_29 = arith.constant 0 : index
      %34 = vector.load %arg5[%c0_28, %c0_29] : memref<8x64xf32, #tpu.memory_space<vmem>>, vector<8x64xf32>
      tpu.vector_store %arg5[%c0_28, %c0_29], %33 {strides = array<i32>} : memref<8x64xf32, #tpu.memory_space<vmem>>, vector<8x64xf32>,
    } else {
    }
    return
  }
  func.func @transform_0(%arg0: i32, %arg1: i32) -> (i32, i32, i32) {
    %c0_i32 = arith.constant 0 : i32
    %c0_i32_0 = arith.constant 0 : i32
    return %arg0, %c0_i32, %arg1 : i32, i32, i32
  }
  func.func @transform_1(%arg0: i32, %arg1: i32) -> (i32, i32) {
    %c0_i32 = arith.constant 0 : i32
    %c0_i32_0 = arith.constant 0 : i32
    %c0_i32_1 = arith.constant 0 : i32
    return %c0_i32, %c0_i32_0 : i32, i32
  }
  func.func @transform_2(%arg0: i32, %arg1: i32) -> (i32, i32) {
    %c0_i32 = arith.constant 0 : i32
    %c0_i32_0 = arith.constant 0 : i32
    %c0_i32_1 = arith.constant 0 : i32
    return %c0_i32, %c0_i32_0 : i32, i32
  }
  func.func @transform_3(%arg0: i32, %arg1: i32) -> (i32, i32) {
    %c0_i32 = arith.constant 0 : i32
    %c0_i32_0 = arith.constant 0 : i32
    return %arg0, %c0_i32 : i32, i32
  }
}

</mosaic_0001>

<llo_original>
// kernel: tpu_custom_call.1
$region0: #{tpu_custom_call.1}
  #allocation0 [shape = 'u32[]', space=smem, size = 0x4, offset = 0x4, fixed_abs, tag = 'smem constant byte address 0x4 - core index']
  #allocation1 [shape = 'u32[72,128]{1,0:T(1,128)}', space=vmem, size = 0x9000, scoped, tag = 'internal scratch']
  #allocation2 [shape = 'f32[16,64]{1,0:T(8,128)}', space=vmem, size = 0x2000, scoped, tag = 'scratch operand']
  %s0 = inlined_call_operand.hbm [shape: f32[8,64,256], index: 0, kind: input, shape index: {}]
  %s1 = inlined_call_operand.vmem [shape: f32[64,4], index: 1, kind: input, shape index: {}]
  %s2 = inlined_call_operand.vmem [shape: f32[4,64], index: 2, kind: input, shape index: {}]
  %s3 = inlined_call_operand.hbm [shape: f32[8,64], index: 3, kind: output, shape index: {}]
  %s4 = sld [smem:[#allocation0]]
  $region34: #{tpu_custom_call.1} parent=0
    _
  %s6 = ssub.s32 1, %s4
  %s7 = scalar_select 0, %s6, %s4
  $region1: #{tpu_custom_call.1} parent=0
    #allocation3 [shape = 'u8[524288]{0}', space=vmem, size = 0x80000, scoped, tag = 'input window, operand 0, single buffered']
    #allocation4 [shape = 's32[1]{0}', space=sflag, size = 0x4, scoped, tag = 'scoped memory for tpu_custom_call.1']
    #allocation5 [shape = 's32[1]{0}', space=sflag, size = 0x4, scoped, tag = 'scoped memory for tpu_custom_call.1']
    #allocation6 [shape = 'u8[4096]{0}', space=vmem, size = 0x1000, scoped, tag = 'output window, operand 0, single buffered']
    %8 = vsyncpa [#allocation4], 0
    %9 = vsyncpa [#allocation5], 0
    // Predicated region
    $region2: #{tpu_custom_call.1} parent=1 // pred_check
      _
    $region3: #{tpu_custom_call.1} parent=1 // pred_check_branch
      %11 = sbr.rel (0) target = $region5
    $region4: #{tpu_custom_call.1} parent=1 // pred_region
      %13 = vsyncadd [#allocation4], 0
      %s14 = sshll.u32 %s0, 4
      %s15 = int_to_ptr.hbm [resolvable:$true] %s14
      %s16 = sshll.u32 [#allocation3], 4
      %s17 = int_to_ptr.vmem [resolvable:$true] %s16
      %22 = dma.hbm_to_vmem [thread:$0]  %s15, 16384, %s17, [#allocation4], 256, 256, 16
    $region5: #{tpu_custom_call.1} parent=1 // pred_fallthru
      _
    // Predicated region
    $region6: #{tpu_custom_call.1} parent=1 // pred_check
      _
    $region7: #{tpu_custom_call.1} parent=1 // pred_check_branch
      %24 = sbr.rel (0) target = $region9
    $region8: #{tpu_custom_call.1} parent=1 // pred_region
      _
    $region9: #{tpu_custom_call.1} parent=1 // pred_fallthru
      _
    // Predicated region
    $region10: #{tpu_custom_call.1} parent=1 // pred_check
      _
    $region11: #{tpu_custom_call.1} parent=1 // pred_check_branch
      %26 = sbr.rel (0) target = $region13
    $region12: #{tpu_custom_call.1} parent=1 // pred_region
      _
    $region13: #{tpu_custom_call.1} parent=1 // pred_fallthru
      _
    // Predicated region
    $region14: #{tpu_custom_call.1} parent=1 // pred_check
      _
    $region15: #{tpu_custom_call.1} parent=1 // pred_check_branch
      %28 = sbr.rel (0) target = $region17
    $region16: #{tpu_custom_call.1} parent=1 // pred_region
      %30 = dma.done [#allocation4], 16384
    $region17: #{tpu_custom_call.1} parent=1 // pred_fallthru
      _
    %p31 = scmp.eq.s32.totalorder 0, 0
    // Predicated region
    $region18: #{tpu_custom_call.1} parent=1 // pred_check
      %p32 = pneg %p31
    $region19: #{tpu_custom_call.1} parent=1 // pred_check_branch
      %34 = sbr.rel (%p32) target = $region21
    $region20: #{tpu_custom_call.1} parent=1 // pred_region
      %vm35 = vcmask 523264
      %36 = vst.msk [vmem:[#allocation2] sm:$0xff] %vm35, 0.0
      %37 = vst.msk [vmem:[#allocation2 + $0x8] sm:$0xff] %vm35, -inf
    $region21: #{tpu_custom_call.1} parent=1 // pred_fallthru
      _
    %v38 = vld [vmem:[#allocation3] sm:$0xff]
    %v39 = vld [vmem:[#allocation3 + $0x8] sm:$0xff]
    %v40 = vld [vmem:[#allocation3 + $0x10] sm:$0xff]
    %v41 = vld [vmem:[#allocation3 + $0x18] sm:$0xff]
    %v42 = vld [vmem:[#allocation3 + $0x20] sm:$0xff]
    %v43 = vld [vmem:[#allocation3 + $0x28] sm:$0xff]
    %v44 = vld [vmem:[#allocation3 + $0x30] sm:$0xff]
    %v45 = vld [vmem:[#allocation3 + $0x38] sm:$0xff]
    %v46 = vld [vmem:[#allocation3 + $0x40] sm:$0xff]
    %v47 = vld [vmem:[#allocation3 + $0x48] sm:$0xff]
    %v48 = vld [vmem:[#allocation3 + $0x50] sm:$0xff]
    %v49 = vld [vmem:[#allocation3 + $0x58] sm:$0xff]
    %v50 = vld [vmem:[#allocation3 + $0x60] sm:$0xff]
    %v51 = vld [vmem:[#allocation3 + $0x68] sm:$0xff]
    %v52 = vld [vmem:[#allocation3 + $0x70] sm:$0xff]
    %v53 = vld [vmem:[#allocation3 + $0x78] sm:$0xff]
    %v54 = vld [vmem:[#allocation3 + $0x80] sm:$0xff]
    %v55 = vld [vmem:[#allocation3 + $0x88] sm:$0xff]
    %v56 = vld [vmem:[#allocation3 + $0x90] sm:$0xff]
    %v57 = vld [vmem:[#allocation3 + $0x98] sm:$0xff]
    %v58 = vld [vmem:[#allocation3 + $0xa0] sm:$0xff]
    %v59 = vld [vmem:[#allocation3 + $0xa8] sm:$0xff]
    %v60 = vld [vmem:[#allocation3 + $0xb0] sm:$0xff]
    %v61 = vld [vmem:[#allocation3 + $0xb8] sm:$0xff]
    %v62 = vld [vmem:[#allocation3 + $0xc0] sm:$0xff]
    %v63 = vld [vmem:[#allocation3 + $0xc8] sm:$0xff]
    %v64 = vld [vmem:[#allocation3 + $0xd0] sm:$0xff]
    %v65 = vld [vmem:[#allocation3 + $0xd8] sm:$0xff]
    %v66 = vld [vmem:[#allocation3 + $0xe0] sm:$0xff]
    %v67 = vld [vmem:[#allocation3 + $0xe8] sm:$0xff]
    %v68 = vld [vmem:[#allocation3 + $0xf0] sm:$0xff]
    %v69 = vld [vmem:[#allocation3 + $0xf8] sm:$0xff]
    %v70 = vld [vmem:[#allocation3 + $0x100] sm:$0xff]
    %v71 = vld [vmem:[#allocation3 + $0x108] sm:$0xff]
    %v72 = vld [vmem:[#allocation3 + $0x110] sm:$0xff]
    %v73 = vld [vmem:[#allocation3 + $0x118] sm:$0xff]
    %v74 = vld [vmem:[#allocation3 + $0x120] sm:$0xff]
    %v75 = vld [vmem:[#allocation3 + $0x128] sm:$0xff]
    %v76 = vld [vmem:[#allocation3 + $0x130] sm:$0xff]
    %v77 = vld [vmem:[#allocation3 + $0x138] sm:$0xff]
    %v78 = vld [vmem:[#allocation3 + $0x140] sm:$0xff]
    %v79 = vld [vmem:[#allocation3 + $0x148] sm:$0xff]
    %v80 = vld [vmem:[#allocation3 + $0x150] sm:$0xff]
    %v81 = vld [vmem:[#allocation3 + $0x158] sm:$0xff]
    %v82 = vld [vmem:[#allocation3 + $0x160] sm:$0xff]
    %v83 = vld [vmem:[#allocation3 + $0x168] sm:$0xff]
    %v84 = vld [vmem:[#allocation3 + $0x170] sm:$0xff]
    %v85 = vld [vmem:[#allocation3 + $0x178] sm:$0xff]
    %v86 = vld [vmem:[#allocation3 + $0x180] sm:$0xff]
    %v87 = vld [vmem:[#allocation3 + $0x188] sm:$0xff]
    %v88 = vld [vmem:[#allocation3 + $0x190] sm:$0xff]
    %v89 = vld [vmem:[#allocation3 + $0x198] sm:$0xff]
    %v90 = vld [vmem:[#allocation3 + $0x1a0] sm:$0xff]
    %v91 = vld [vmem:[#allocation3 + $0x1a8] sm:$0xff]
    %v92 = vld [vmem:[#allocation3 + $0x1b0] sm:$0xff]
    %v93 = vld [vmem:[#allocation3 + $0x1b8] sm:$0xff]
    %v94 = vld [vmem:[#allocation3 + $0x1c0] sm:$0xff]
    %v95 = vld [vmem:[#allocation3 + $0x1c8] sm:$0xff]
    %v96 = vld [vmem:[#allocation3 + $0x1d0] sm:$0xff]
    %v97 = vld [vmem:[#allocation3 + $0x1d8] sm:$0xff]
    %v98 = vld [vmem:[#allocation3 + $0x1e0] sm:$0xff]
    %v99 = vld [vmem:[#allocation3 + $0x1e8] sm:$0xff]
    %v100 = vld [vmem:[#allocation3 + $0x1f0] sm:$0xff]
    %v101 = vld [vmem:[#allocation3 + $0x1f8] sm:$0xff]
    %v102 = vld [vmem:[#allocation3 + $0x200] sm:$0xff]
    %v103 = vld [vmem:[#allocation3 + $0x208] sm:$0xff]
    %v104 = vld [vmem:[#allocation3 + $0x210] sm:$0xff]
    %v105 = vld [vmem:[#allocation3 + $0x218] sm:$0xff]
    %v106 = vld [vmem:[#allocation3 + $0x220] sm:$0xff]
    %v107 = vld [vmem:[#allocation3 + $0x228] sm:$0xff]
    %v108 = vld [vmem:[#allocation3 + $0x230] sm:$0xff]
    %v109 = vld [vmem:[#allocation3 + $0x238] sm:$0xff]
    %v110 = vld [vmem:[#allocation3 + $0x240] sm:$0xff]
    %v111 = vld [vmem:[#allocation3 + $0x248] sm:$0xff]
    %v112 = vld [vmem:[#allocation3 + $0x250] sm:$0xff]
    %v113 = vld [vmem:[#allocation3 + $0x258] sm:$0xff]
    %v114 = vld [vmem:[#allocation3 + $0x260] sm:$0xff]
    %v115 = vld [vmem:[#allocation3 + $0x268] sm:$0xff]
    %v116 = vld [vmem:[#allocation3 + $0x270] sm:$0xff]
    %v117 = vld [vmem:[#allocation3 + $0x278] sm:$0xff]
    %v118 = vld [vmem:[#allocation3 + $0x280] sm:$0xff]
    %v119 = vld [vmem:[#allocation3 + $0x288] sm:$0xff]
    %v120 = vld [vmem:[#allocation3 + $0x290] sm:$0xff]
    %v121 = vld [vmem:[#allocation3 + $0x298] sm:$0xff]
    %v122 = vld [vmem:[#allocation3 + $0x2a0] sm:$0xff]
    %v123 = vld [vmem:[#allocation3 + $0x2a8] sm:$0xff]
    %v124 = vld [vmem:[#allocation3 + $0x2b0] sm:$0xff]
    %v125 = vld [vmem:[#allocation3 + $0x2b8] sm:$0xff]
    %v126 = vld [vmem:[#allocation3 + $0x2c0] sm:$0xff]
    %v127 = vld [vmem:[#allocation3 + $0x2c8] sm:$0xff]
    %v128 = vld [vmem:[#allocation3 + $0x2d0] sm:$0xff]
    %v129 = vld [vmem:[#allocation3 + $0x2d8] sm:$0xff]
    %v130 = vld [vmem:[#allocation3 + $0x2e0] sm:$0xff]
    %v131 = vld [vmem:[#allocation3 + $0x2e8] sm:$0xff]
    %v132 = vld [vmem:[#allocation3 + $0x2f0] sm:$0xff]
    %v133 = vld [vmem:[#allocation3 + $0x2f8] sm:$0xff]
    %v134 = vld [vmem:[#allocation3 + $0x300] sm:$0xff]
    %v135 = vld [vmem:[#allocation3 + $0x308] sm:$0xff]
    %v136 = vld [vmem:[#allocation3 + $0x310] sm:$0xff]
    %v137 = vld [vmem:[#allocation3 + $0x318] sm:$0xff]
    %v138 = vld [vmem:[#allocation3 + $0x320] sm:$0xff]
    %v139 = vld [vmem:[#allocation3 + $0x328] sm:$0xff]
    %v140 = vld [vmem:[#allocation3 + $0x330] sm:$0xff]
    %v141 = vld [vmem:[#allocation3 + $0x338] sm:$0xff]
    %v142 = vld [vmem:[#allocation3 + $0x340] sm:$0xff]
    %v143 = vld [vmem:[#allocation3 + $0x348] sm:$0xff]
    %v144 = vld [vmem:[#allocation3 + $0x350] sm:$0xff]
    %v145 = vld [vmem:[#allocation3 + $0x358] sm:$0xff]
    %v146 = vld [vmem:[#allocation3 + $0x360] sm:$0xff]
    %v147 = vld [vmem:[#allocation3 + $0x368] sm:$0xff]
    %v148 = vld [vmem:[#allocation3 + $0x370] sm:$0xff]
    %v149 = vld [vmem:[#allocation3 + $0x378] sm:$0xff]
    %v150 = vld [vmem:[#allocation3 + $0x380] sm:$0xff]
    %v151 = vld [vmem:[#allocation3 + $0x388] sm:$0xff]
    %v152 = vld [vmem:[#allocation3 + $0x390] sm:$0xff]
    %v153 = vld [vmem:[#allocation3 + $0x398] sm:$0xff]
    %v154 = vld [vmem:[#allocation3 + $0x3a0] sm:$0xff]
    %v155 = vld [vmem:[#allocation3 + $0x3a8] sm:$0xff]
    %v156 = vld [vmem:[#allocation3 + $0x3b0] sm:$0xff]
    %v157 = vld [vmem:[#allocation3 + $0x3b8] sm:$0xff]
    %v158 = vld [vmem:[#allocation3 + $0x3c0] sm:$0xff]
    %v159 = vld [vmem:[#allocation3 + $0x3c8] sm:$0xff]
    %v160 = vld [vmem:[#allocation3 + $0x3d0] sm:$0xff]
    %v161 = vld [vmem:[#allocation3 + $0x3d8] sm:$0xff]
    %v162 = vld [vmem:[#allocation3 + $0x3e0] sm:$0xff]
    %v163 = vld [vmem:[#allocation3 + $0x3e8] sm:$0xff]
    %v164 = vld [vmem:[#allocation3 + $0x3f0] sm:$0xff]
    %v165 = vld [vmem:[#allocation3 + $0x3f8] sm:$0xff]
    %v166 = vld [vmem:[#allocation2] sm:$0xff]
    %v167 = vadd.f32 %v38, %v39
    %168 = vadd.xlane.f32.xlu0 %v167
    %v169 = vpop.xlane.xlu0 %168
    %v170 = vadd.f32 %v40, %v41
    %171 = vadd.xlane.f32.xlu0 %v170
    %v172 = vpop.xlane.xlu0 %171
    %v173 = vadd.f32 %v42, %v43
    %174 = vadd.xlane.f32.xlu0 %v173
    %v175 = vpop.xlane.xlu0 %174
    %v176 = vadd.f32 %v44, %v45
    %177 = vadd.xlane.f32.xlu0 %v176
    %v178 = vpop.xlane.xlu0 %177
    %v179 = vadd.f32 %v46, %v47
    %180 = vadd.xlane.f32.xlu0 %v179
    %v181 = vpop.xlane.xlu0 %180
    %v182 = vadd.f32 %v48, %v49
    %183 = vadd.xlane.f32.xlu0 %v182
    %v184 = vpop.xlane.xlu0 %183
    %v185 = vadd.f32 %v50, %v51
    %186 = vadd.xlane.f32.xlu0 %v185
    %v187 = vpop.xlane.xlu0 %186
    %v188 = vadd.f32 %v52, %v53
    %189 = vadd.xlane.f32.xlu0 %v188
    %v190 = vpop.xlane.xlu0 %189
    %v191 = vadd.f32 %v54, %v55
    %192 = vadd.xlane.f32.xlu0 %v191
    %v193 = vpop.xlane.xlu0 %192
    %v194 = vadd.f32 %v56, %v57
    %195 = vadd.xlane.f32.xlu0 %v194
    %v196 = vpop.xlane.xlu0 %195
    %v197 = vadd.f32 %v58, %v59
    %198 = vadd.xlane.f32.xlu0 %v197
    %v199 = vpop.xlane.xlu0 %198
    %v200 = vadd.f32 %v60, %v61
    %201 = vadd.xlane.f32.xlu0 %v200
    %v202 = vpop.xlane.xlu0 %201
    %v203 = vadd.f32 %v62, %v63
    %204 = vadd.xlane.f32.xlu0 %v203
    %v205 = vpop.xlane.xlu0 %204
    %v206 = vadd.f32 %v64, %v65
    %207 = vadd.xlane.f32.xlu0 %v206
    %v208 = vpop.xlane.xlu0 %207
    %v209 = vadd.f32 %v66, %v67
    %210 = vadd.xlane.f32.xlu0 %v209
    %v211 = vpop.xlane.xlu0 %210
    %v212 = vadd.f32 %v68, %v69
    %213 = vadd.xlane.f32.xlu0 %v212
    %v214 = vpop.xlane.xlu0 %213
    %v215 = vadd.f32 %v70, %v71
    %216 = vadd.xlane.f32.xlu0 %v215
    %v217 = vpop.xlane.xlu0 %216
    %v218 = vadd.f32 %v72, %v73
    %219 = vadd.xlane.f32.xlu0 %v218
    %v220 = vpop.xlane.xlu0 %219
    %v221 = vadd.f32 %v74, %v75
    %222 = vadd.xlane.f32.xlu0 %v221
    %v223 = vpop.xlane.xlu0 %222
    %v224 = vadd.f32 %v76, %v77
    %225 = vadd.xlane.f32.xlu0 %v224
    %v226 = vpop.xlane.xlu0 %225
    %v227 = vadd.f32 %v78, %v79
    %228 = vadd.xlane.f32.xlu0 %v227
    %v229 = vpop.xlane.xlu0 %228
    %v230 = vadd.f32 %v80, %v81
    %231 = vadd.xlane.f32.xlu0 %v230
    %v232 = vpop.xlane.xlu0 %231
    %v233 = vadd.f32 %v82, %v83
    %234 = vadd.xlane.f32.xlu0 %v233
    %v235 = vpop.xlane.xlu0 %234
    %v236 = vadd.f32 %v84, %v85
    %237 = vadd.xlane.f32.xlu0 %v236
    %v238 = vpop.xlane.xlu0 %237
    %v239 = vadd.f32 %v86, %v87
    %240 = vadd.xlane.f32.xlu0 %v239
    %v241 = vpop.xlane.xlu0 %240
    %v242 = vadd.f32 %v88, %v89
    %243 = vadd.xlane.f32.xlu0 %v242
    %v244 = vpop.xlane.xlu0 %243
    %v245 = vadd.f32 %v90, %v91
    %246 = vadd.xlane.f32.xlu0 %v245
    %v247 = vpop.xlane.xlu0 %246
    %v248 = vadd.f32 %v92, %v93
    %249 = vadd.xlane.f32.xlu0 %v248
    %v250 = vpop.xlane.xlu0 %249
    %v251 = vadd.f32 %v94, %v95
    %252 = vadd.xlane.f32.xlu0 %v251
    %v253 = vpop.xlane.xlu0 %252
    %v254 = vadd.f32 %v96, %v97
    %255 = vadd.xlane.f32.xlu0 %v254
    %v256 = vpop.xlane.xlu0 %255
    %v257 = vadd.f32 %v98, %v99
    %258 = vadd.xlane.f32.xlu0 %v257
    %v259 = vpop.xlane.xlu0 %258
    %v260 = vadd.f32 %v100, %v101
    %261 = vadd.xlane.f32.xlu0 %v260
    %v262 = vpop.xlane.xlu0 %261
    %v263 = vadd.f32 %v102, %v103
    %264 = vadd.xlane.f32.xlu0 %v263
    %v265 = vpop.xlane.xlu0 %264
    %v266 = vadd.f32 %v104, %v105
    %267 = vadd.xlane.f32.xlu0 %v266
    %v268 = vpop.xlane.xlu0 %267
    %v269 = vadd.f32 %v106, %v107
    %270 = vadd.xlane.f32.xlu0 %v269
    %v271 = vpop.xlane.xlu0 %270
    %v272 = vadd.f32 %v108, %v109
    %273 = vadd.xlane.f32.xlu0 %v272
    %v274 = vpop.xlane.xlu0 %273
    %v275 = vadd.f32 %v110, %v111
    %276 = vadd.xlane.f32.xlu0 %v275
    %v277 = vpop.xlane.xlu0 %276
    %v278 = vadd.f32 %v112, %v113
    %279 = vadd.xlane.f32.xlu0 %v278
    %v280 = vpop.xlane.xlu0 %279
    %v281 = vadd.f32 %v114, %v115
    %282 = vadd.xlane.f32.xlu0 %v281
    %v283 = vpop.xlane.xlu0 %282
    %v284 = vadd.f32 %v116, %v117
    %285 = vadd.xlane.f32.xlu0 %v284
    %v286 = vpop.xlane.xlu0 %285
    %v287 = vadd.f32 %v118, %v119
    %288 = vadd.xlane.f32.xlu0 %v287
    %v289 = vpop.xlane.xlu0 %288
    %v290 = vadd.f32 %v120, %v121
    %291 = vadd.xlane.f32.xlu0 %v290
    %v292 = vpop.xlane.xlu0 %291
    %v293 = vadd.f32 %v122, %v123
    %294 = vadd.xlane.f32.xlu0 %v293
    %v295 = vpop.xlane.xlu0 %294
    %v296 = vadd.f32 %v124, %v125
    %297 = vadd.xlane.f32.xlu0 %v296
    %v298 = vpop.xlane.xlu0 %297
    %v299 = vadd.f32 %v126, %v127
    %300 = vadd.xlane.f32.xlu0 %v299
    %v301 = vpop.xlane.xlu0 %300
    %v302 = vadd.f32 %v128, %v129
    %303 = vadd.xlane.f32.xlu0 %v302
    %v304 = vpop.xlane.xlu0 %303
    %v305 = vadd.f32 %v130, %v131
    %306 = vadd.xlane.f32.xlu0 %v305
    %v307 = vpop.xlane.xlu0 %306
    %v308 = vadd.f32 %v132, %v133
    %309 = vadd.xlane.f32.xlu0 %v308
    %v310 = vpop.xlane.xlu0 %309
    %v311 = vadd.f32 %v134, %v135
    %312 = vadd.xlane.f32.xlu0 %v311
    %v313 = vpop.xlane.xlu0 %312
    %v314 = vadd.f32 %v136, %v137
    %315 = vadd.xlane.f32.xlu0 %v314
    %v316 = vpop.xlane.xlu0 %315
    %v317 = vadd.f32 %v138, %v139
    %318 = vadd.xlane.f32.xlu0 %v317
    %v319 = vpop.xlane.xlu0 %318
    %v320 = vadd.f32 %v140, %v141
    %321 = vadd.xlane.f32.xlu0 %v320
    %v322 = vpop.xlane.xlu0 %321
    %v323 = vadd.f32 %v142, %v143
    %324 = vadd.xlane.f32.xlu0 %v323
    %v325 = vpop.xlane.xlu0 %324
    %v326 = vadd.f32 %v144, %v145
    %327 = vadd.xlane.f32.xlu0 %v326
    %v328 = vpop.xlane.xlu0 %327
    %v329 = vadd.f32 %v146, %v147
    %330 = vadd.xlane.f32.xlu0 %v329
    %v331 = vpop.xlane.xlu0 %330
    %v332 = vadd.f32 %v148, %v149
    %333 = vadd.xlane.f32.xlu0 %v332
    %v334 = vpop.xlane.xlu0 %333
    %v335 = vadd.f32 %v150, %v151
    %336 = vadd.xlane.f32.xlu0 %v335
    %v337 = vpop.xlane.xlu0 %336
    %v338 = vadd.f32 %v152, %v153
    %339 = vadd.xlane.f32.xlu0 %v338
    %v340 = vpop.xlane.xlu0 %339
    %v341 = vadd.f32 %v154, %v155
    %342 = vadd.xlane.f32.xlu0 %v341
    %v343 = vpop.xlane.xlu0 %342
    %v344 = vadd.f32 %v156, %v157
    %345 = vadd.xlane.f32.xlu0 %v344
    %v346 = vpop.xlane.xlu0 %345
    %v347 = vadd.f32 %v158, %v159
    %348 = vadd.xlane.f32.xlu0 %v347
    %v349 = vpop.xlane.xlu0 %348
    %v350 = vadd.f32 %v160, %v161
    %351 = vadd.xlane.f32.xlu0 %v350
    %v352 = vpop.xlane.xlu0 %351
    %v353 = vadd.f32 %v162, %v163
    %354 = vadd.xlane.f32.xlu0 %v353
    %v355 = vpop.xlane.xlu0 %354
    %v356 = vadd.f32 %v164, %v165
    %357 = vadd.xlane.f32.xlu0 %v356
    %v358 = vpop.xlane.xlu0 %357
    %v423 = vlaneseq
    %v424 = vand.u32 %v423, 127
    %v425 = vperm.slane %v169, %v424
    %v426 = vadd.s32 %v424, 4294967288
    %v427 = vperm.slane %v172, %v426
    %vm428 = vcmask 130112
    %v429 = vsel %vm428, %v427, %v425
    %v430 = vadd.s32 %v424, 4294967280
    %v431 = vperm.slane %v175, %v430
    %vm432 = vcmask 195712
    %v433 = vsel %vm432, %v431, %v429
    %v434 = vadd.s32 %v424, 4294967272
    %v435 = vperm.slane %v178, %v434
    %vm436 = vcmask 261312
    %v437 = vsel %vm436, %v435, %v433
    %v438 = vadd.s32 %v424, 4294967264
    %v439 = vperm.slane %v181, %v438
    %vm440 = vcmask 326912
    %v441 = vsel %vm440, %v439, %v437
    %v442 = vadd.s32 %v424, 4294967256
    %v443 = vperm.slane %v184, %v442
    %vm444 = vcmask 392512
    %v445 = vsel %vm444, %v443, %v441
    %v446 = vadd.s32 %v424, 4294967248
    %v447 = vperm.slane %v187, %v446
    %vm448 = vcmask 458112
    %v449 = vsel %vm448, %v447, %v445
    %v450 = vadd.s32 %v424, 4294967240
    %v451 = vperm.slane %v190, %v450
    %vm452 = vcmask 523712
    %v453 = vsel %vm452, %v451, %v449
    %v454 = vperm.slane %v193, %v424
    %v455 = vperm.slane %v196, %v426
    %v456 = vsel %vm428, %v455, %v454
    %v457 = vperm.slane %v199, %v430
    %v458 = vsel %vm432, %v457, %v456
    %v459 = vperm.slane %v202, %v434
    %v460 = vsel %vm436, %v459, %v458
    %v461 = vperm.slane %v205, %v438
    %v462 = vsel %vm440, %v461, %v460
    %v463 = vperm.slane %v208, %v442
    %v464 = vsel %vm444, %v463, %v462
    %v465 = vperm.slane %v211, %v446
    %v466 = vsel %vm448, %v465, %v464
    %v467 = vperm.slane %v214, %v450
    %v468 = vsel %vm452, %v467, %v466
    %v469 = vperm.slane %v217, %v424
    %v470 = vperm.slane %v220, %v426
    %v471 = vsel %vm428, %v470, %v469
    %v472 = vperm.slane %v223, %v430
    %v473 = vsel %vm432, %v472, %v471
    %v474 = vperm.slane %v226, %v434
    %v475 = vsel %vm436, %v474, %v473
    %v476 = vperm.slane %v229, %v438
    %v477 = vsel %vm440, %v476, %v475
    %v478 = vperm.slane %v232, %v442
    %v479 = vsel %vm444, %v478, %v477
    %v480 = vperm.slane %v235, %v446
    %v481 = vsel %vm448, %v480, %v479
    %v482 = vperm.slane %v238, %v450
    %v483 = vsel %vm452, %v482, %v481
    %v484 = vperm.slane %v241, %v424
    %v485 = vperm.slane %v244, %v426
    %v486 = vsel %vm428, %v485, %v484
    %v487 = vperm.slane %v247, %v430
    %v488 = vsel %vm432, %v487, %v486
    %v489 = vperm.slane %v250, %v434
    %v490 = vsel %vm436, %v489, %v488
    %v491 = vperm.slane %v253, %v438
    %v492 = vsel %vm440, %v491, %v490
    %v493 = vperm.slane %v256, %v442
    %v494 = vsel %vm444, %v493, %v492
    %v495 = vperm.slane %v259, %v446
    %v496 = vsel %vm448, %v495, %v494
    %v497 = vperm.slane %v262, %v450
    %v498 = vsel %vm452, %v497, %v496
    %v499 = vperm.slane %v265, %v424
    %v500 = vperm.slane %v268, %v426
    %v501 = vsel %vm428, %v500, %v499
    %v502 = vperm.slane %v271, %v430
    %v503 = vsel %vm432, %v502, %v501
    %v504 = vperm.slane %v274, %v434
    %v505 = vsel %vm436, %v504, %v503
    %v506 = vperm.slane %v277, %v438
    %v507 = vsel %vm440, %v506, %v505
    %v508 = vperm.slane %v280, %v442
    %v509 = vsel %vm444, %v508, %v507
    %v510 = vperm.slane %v283, %v446
    %v511 = vsel %vm448, %v510, %v509
    %v512 = vperm.slane %v286, %v450
    %v513 = vsel %vm452, %v512, %v511
    %v514 = vperm.slane %v289, %v424
    %v515 = vperm.slane %v292, %v426
    %v516 = vsel %vm428, %v515, %v514
    %v517 = vperm.slane %v295, %v430
    %v518 = vsel %vm432, %v517, %v516
    %v519 = vperm.slane %v298, %v434
    %v520 = vsel %vm436, %v519, %v518
    %v521 = vperm.slane %v301, %v438
    %v522 = vsel %vm440, %v521, %v520
    %v523 = vperm.slane %v304, %v442
    %v524 = vsel %vm444, %v523, %v522
    %v525 = vperm.slane %v307, %v446
    %v526 = vsel %vm448, %v525, %v524
    %v527 = vperm.slane %v310, %v450
    %v528 = vsel %vm452, %v527, %v526
    %v529 = vperm.slane %v313, %v424
    %v530 = vperm.slane %v316, %v426
    %v531 = vsel %vm428, %v530, %v529
    %v532 = vperm.slane %v319, %v430
    %v533 = vsel %vm432, %v532, %v531
    %v534 = vperm.slane %v322, %v434
    %v535 = vsel %vm436, %v534, %v533
    %v536 = vperm.slane %v325, %v438
    %v537 = vsel %vm440, %v536, %v535
    %v538 = vperm.slane %v328, %v442
    %v539 = vsel %vm444, %v538, %v537
    %v540 = vperm.slane %v331, %v446
    %v541 = vsel %vm448, %v540, %v539
    %v542 = vperm.slane %v334, %v450
    %v543 = vsel %vm452, %v542, %v541
    %v544 = vperm.slane %v337, %v424
    %v545 = vperm.slane %v340, %v426
    %v546 = vsel %vm428, %v545, %v544
    %v547 = vperm.slane %v343, %v430
    %v548 = vsel %vm432, %v547, %v546
    %v549 = vperm.slane %v346, %v434
    %v550 = vsel %vm436, %v549, %v548
    %v551 = vperm.slane %v349, %v438
    %v552 = vsel %vm440, %v551, %v550
    %v553 = vperm.slane %v352, %v442
    %v554 = vsel %vm444, %v553, %v552
    %v555 = vperm.slane %v355, %v446
    %v556 = vsel %vm448, %v555, %v554
    %v557 = vperm.slane %v358, %v450
    %v558 = vsel %vm452, %v557, %v556
    %vm559 = vcmask 1041409
    %v560 = vsel %vm559, %v468, %v453
    %vm561 = vcmask 1042434
    %v562 = vsel %vm561, %v483, %v560
    %vm563 = vcmask 1043459
    %v564 = vsel %vm563, %v498, %v562
    %vm565 = vcmask 1044484
    %v566 = vsel %vm565, %v513, %v564
    %vm567 = vcmask 1045509
    %v568 = vsel %vm567, %v528, %v566
    %vm569 = vcmask 1046534
    %v570 = vsel %vm569, %v543, %v568
    %vm571 = vcmask 1047559
    %v572 = vsel %vm571, %v558, %v570
    %v574 = vadd.f32 %v166, %v572
    %vm575 = vcmask 523264
    %576 = vst.msk [vmem:[#allocation2] sm:$0xff] %vm575, %v574
    %v577 = vld [vmem:[#allocation2 + $0x8] sm:$0xff]
    %v578 = vmax.f32 %v38, %v39
    %579 = vmax.xlane.f32.xlu0 %v578
    %v580 = vpop.xlane.xlu0 %579
    %v581 = vmax.f32 %v40, %v41
    %582 = vmax.xlane.f32.xlu0 %v581
    %v583 = vpop.xlane.xlu0 %582
    %v584 = vmax.f32 %v42, %v43
    %585 = vmax.xlane.f32.xlu0 %v584
    %v586 = vpop.xlane.xlu0 %585
    %v587 = vmax.f32 %v44, %v45
    %588 = vmax.xlane.f32.xlu0 %v587
    %v589 = vpop.xlane.xlu0 %588
    %v590 = vmax.f32 %v46, %v47
    %591 = vmax.xlane.f32.xlu0 %v590
    %v592 = vpop.xlane.xlu0 %591
    %v593 = vmax.f32 %v48, %v49
    %594 = vmax.xlane.f32.xlu0 %v593
    %v595 = vpop.xlane.xlu0 %594
    %v596 = vmax.f32 %v50, %v51
    %597 = vmax.xlane.f32.xlu0 %v596
    %v598 = vpop.xlane.xlu0 %597
    %v599 = vmax.f32 %v52, %v53
    %600 = vmax.xlane.f32.xlu0 %v599
    %v601 = vpop.xlane.xlu0 %600
    %v602 = vmax.f32 %v54, %v55
    %603 = vmax.xlane.f32.xlu0 %v602
    %v604 = vpop.xlane.xlu0 %603
    %v605 = vmax.f32 %v56, %v57
    %606 = vmax.xlane.f32.xlu0 %v605
    %v607 = vpop.xlane.xlu0 %606
    %v608 = vmax.f32 %v58, %v59
    %609 = vmax.xlane.f32.xlu0 %v608
    %v610 = vpop.xlane.xlu0 %609
    %v611 = vmax.f32 %v60, %v61
    %612 = vmax.xlane.f32.xlu0 %v611
    %v613 = vpop.xlane.xlu0 %612
    %v614 = vmax.f32 %v62, %v63
    %615 = vmax.xlane.f32.xlu0 %v614
    %v616 = vpop.xlane.xlu0 %615
    %v617 = vmax.f32 %v64, %v65
    %618 = vmax.xlane.f32.xlu0 %v617
    %v619 = vpop.xlane.xlu0 %618
    %v620 = vmax.f32 %v66, %v67
    %621 = vmax.xlane.f32.xlu0 %v620
    %v622 = vpop.xlane.xlu0 %621
    %v623 = vmax.f32 %v68, %v69
    %624 = vmax.xlane.f32.xlu0 %v623
    %v625 = vpop.xlane.xlu0 %624
    %v626 = vmax.f32 %v70, %v71
    %627 = vmax.xlane.f32.xlu0 %v626
    %v628 = vpop.xlane.xlu0 %627
    %v629 = vmax.f32 %v72, %v73
    %630 = vmax.xlane.f32.xlu0 %v629
    %v631 = vpop.xlane.xlu0 %630
    %v632 = vmax.f32 %v74, %v75
    %633 = vmax.xlane.f32.xlu0 %v632
    %v634 = vpop.xlane.xlu0 %633
    %v635 = vmax.f32 %v76, %v77
    %636 = vmax.xlane.f32.xlu0 %v635
    %v637 = vpop.xlane.xlu0 %636
    %v638 = vmax.f32 %v78, %v79
    %639 = vmax.xlane.f32.xlu0 %v638
    %v640 = vpop.xlane.xlu0 %639
    %v641 = vmax.f32 %v80, %v81
    %642 = vmax.xlane.f32.xlu0 %v641
    %v643 = vpop.xlane.xlu0 %642
    %v644 = vmax.f32 %v82, %v83
    %645 = vmax.xlane.f32.xlu0 %v644
    %v646 = vpop.xlane.xlu0 %645
    %v647 = vmax.f32 %v84, %v85
    %648 = vmax.xlane.f32.xlu0 %v647
    %v649 = vpop.xlane.xlu0 %648
    %v650 = vmax.f32 %v86, %v87
    %651 = vmax.xlane.f32.xlu0 %v650
    %v652 = vpop.xlane.xlu0 %651
    %v653 = vmax.f32 %v88, %v89
    %654 = vmax.xlane.f32.xlu0 %v653
    %v655 = vpop.xlane.xlu0 %654
    %v656 = vmax.f32 %v90, %v91
    %657 = vmax.xlane.f32.xlu0 %v656
    %v658 = vpop.xlane.xlu0 %657
    %v659 = vmax.f32 %v92, %v93
    %660 = vmax.xlane.f32.xlu0 %v659
    %v661 = vpop.xlane.xlu0 %660
    %v662 = vmax.f32 %v94, %v95
    %663 = vmax.xlane.f32.xlu0 %v662
    %v664 = vpop.xlane.xlu0 %663
    %v665 = vmax.f32 %v96, %v97
    %666 = vmax.xlane.f32.xlu0 %v665
    %v667 = vpop.xlane.xlu0 %666
    %v668 = vmax.f32 %v98, %v99
    %669 = vmax.xlane.f32.xlu0 %v668
    %v670 = vpop.xlane.xlu0 %669
    %v671 = vmax.f32 %v100, %v101
    %672 = vmax.xlane.f32.xlu0 %v671
    %v673 = vpop.xlane.xlu0 %672
    %v674 = vmax.f32 %v102, %v103
    %675 = vmax.xlane.f32.xlu0 %v674
    %v676 = vpop.xlane.xlu0 %675
    %v677 = vmax.f32 %v104, %v105
    %678 = vmax.xlane.f32.xlu0 %v677
    %v679 = vpop.xlane.xlu0 %678
    %v680 = vmax.f32 %v106, %v107
    %681 = vmax.xlane.f32.xlu0 %v680
    %v682 = vpop.xlane.xlu0 %681
    %v683 = vmax.f32 %v108, %v109
    %684 = vmax.xlane.f32.xlu0 %v683
    %v685 = vpop.xlane.xlu0 %684
    %v686 = vmax.f32 %v110, %v111
    %687 = vmax.xlane.f32.xlu0 %v686
    %v688 = vpop.xlane.xlu0 %687
    %v689 = vmax.f32 %v112, %v113
    %690 = vmax.xlane.f32.xlu0 %v689
    %v691 = vpop.xlane.xlu0 %690
    %v692 = vmax.f32 %v114, %v115
    %693 = vmax.xlane.f32.xlu0 %v692
    %v694 = vpop.xlane.xlu0 %693
    %v695 = vmax.f32 %v116, %v117
    %696 = vmax.xlane.f32.xlu0 %v695
    %v697 = vpop.xlane.xlu0 %696
    %v698 = vmax.f32 %v118, %v119
    %699 = vmax.xlane.f32.xlu0 %v698
    %v700 = vpop.xlane.xlu0 %699
    %v701 = vmax.f32 %v120, %v121
    %702 = vmax.xlane.f32.xlu0 %v701
    %v703 = vpop.xlane.xlu0 %702
    %v704 = vmax.f32 %v122, %v123
    %705 = vmax.xlane.f32.xlu0 %v704
    %v706 = vpop.xlane.xlu0 %705
    %v707 = vmax.f32 %v124, %v125
    %708 = vmax.xlane.f32.xlu0 %v707
    %v709 = vpop.xlane.xlu0 %708
    %v710 = vmax.f32 %v126, %v127
    %711 = vmax.xlane.f32.xlu0 %v710
    %v712 = vpop.xlane.xlu0 %711
    %v713 = vmax.f32 %v128, %v129
    %714 = vmax.xlane.f32.xlu0 %v713
    %v715 = vpop.xlane.xlu0 %714
    %v716 = vmax.f32 %v130, %v131
    %717 = vmax.xlane.f32.xlu0 %v716
    %v718 = vpop.xlane.xlu0 %717
    %v719 = vmax.f32 %v132, %v133
    %720 = vmax.xlane.f32.xlu0 %v719
    %v721 = vpop.xlane.xlu0 %720
    %v722 = vmax.f32 %v134, %v135
    %723 = vmax.xlane.f32.xlu0 %v722
    %v724 = vpop.xlane.xlu0 %723
    %v725 = vmax.f32 %v136, %v137
    %726 = vmax.xlane.f32.xlu0 %v725
    %v727 = vpop.xlane.xlu0 %726
    %v728 = vmax.f32 %v138, %v139
    %729 = vmax.xlane.f32.xlu0 %v728
    %v730 = vpop.xlane.xlu0 %729
    %v731 = vmax.f32 %v140, %v141
    %732 = vmax.xlane.f32.xlu0 %v731
    %v733 = vpop.xlane.xlu0 %732
    %v734 = vmax.f32 %v142, %v143
    %735 = vmax.xlane.f32.xlu0 %v734
    %v736 = vpop.xlane.xlu0 %735
    %v737 = vmax.f32 %v144, %v145
    %738 = vmax.xlane.f32.xlu0 %v737
    %v739 = vpop.xlane.xlu0 %738
    %v740 = vmax.f32 %v146, %v147
    %741 = vmax.xlane.f32.xlu0 %v740
    %v742 = vpop.xlane.xlu0 %741
    %v743 = vmax.f32 %v148, %v149
    %744 = vmax.xlane.f32.xlu0 %v743
    %v745 = vpop.xlane.xlu0 %744
    %v746 = vmax.f32 %v150, %v151
    %747 = vmax.xlane.f32.xlu0 %v746
    %v748 = vpop.xlane.xlu0 %747
    %v749 = vmax.f32 %v152, %v153
    %750 = vmax.xlane.f32.xlu0 %v749
    %v751 = vpop.xlane.xlu0 %750
    %v752 = vmax.f32 %v154, %v155
    %753 = vmax.xlane.f32.xlu0 %v752
    %v754 = vpop.xlane.xlu0 %753
    %v755 = vmax.f32 %v156, %v157
    %756 = vmax.xlane.f32.xlu0 %v755
    %v757 = vpop.xlane.xlu0 %756
    %v758 = vmax.f32 %v158, %v159
    %759 = vmax.xlane.f32.xlu0 %v758
    %v760 = vpop.xlane.xlu0 %759
    %v761 = vmax.f32 %v160, %v161
    %762 = vmax.xlane.f32.xlu0 %v761
    %v763 = vpop.xlane.xlu0 %762
    %v764 = vmax.f32 %v162, %v163
    %765 = vmax.xlane.f32.xlu0 %v764
    %v766 = vpop.xlane.xlu0 %765
    %v767 = vmax.f32 %v164, %v165
    %768 = vmax.xlane.f32.xlu0 %v767
    %v769 = vpop.xlane.xlu0 %768
    %v834 = vperm.slane %v580, %v424
    %v835 = vperm.slane %v583, %v426
    %v836 = vsel %vm428, %v835, %v834
    %v837 = vperm.slane %v586, %v430
    %v838 = vsel %vm432, %v837, %v836
    %v839 = vperm.slane %v589, %v434
    %v840 = vsel %vm436, %v839, %v838
    %v841 = vperm.slane %v592, %v438
    %v842 = vsel %vm440, %v841, %v840
    %v843 = vperm.slane %v595, %v442
    %v844 = vsel %vm444, %v843, %v842
    %v845 = vperm.slane %v598, %v446
    %v846 = vsel %vm448, %v845, %v844
    %v847 = vperm.slane %v601, %v450
    %v848 = vsel %vm452, %v847, %v846
    %v849 = vperm.slane %v604, %v424
    %v850 = vperm.slane %v607, %v426
    %v851 = vsel %vm428, %v850, %v849
    %v852 = vperm.slane %v610, %v430
    %v853 = vsel %vm432, %v852, %v851
    %v854 = vperm.slane %v613, %v434
    %v855 = vsel %vm436, %v854, %v853
    %v856 = vperm.slane %v616, %v438
    %v857 = vsel %vm440, %v856, %v855
    %v858 = vperm.slane %v619, %v442
    %v859 = vsel %vm444, %v858, %v857
    %v860 = vperm.slane %v622, %v446
    %v861 = vsel %vm448, %v860, %v859
    %v862 = vperm.slane %v625, %v450
    %v863 = vsel %vm452, %v862, %v861
    %v864 = vperm.slane %v628, %v424
    %v865 = vperm.slane %v631, %v426
    %v866 = vsel %vm428, %v865, %v864
    %v867 = vperm.slane %v634, %v430
    %v868 = vsel %vm432, %v867, %v866
    %v869 = vperm.slane %v637, %v434
    %v870 = vsel %vm436, %v869, %v868
    %v871 = vperm.slane %v640, %v438
    %v872 = vsel %vm440, %v871, %v870
    %v873 = vperm.slane %v643, %v442
    %v874 = vsel %vm444, %v873, %v872
    %v875 = vperm.slane %v646, %v446
    %v876 = vsel %vm448, %v875, %v874
    %v877 = vperm.slane %v649, %v450
    %v878 = vsel %vm452, %v877, %v876
    %v879 = vperm.slane %v652, %v424
    %v880 = vperm.slane %v655, %v426
    %v881 = vsel %vm428, %v880, %v879
    %v882 = vperm.slane %v658, %v430
    %v883 = vsel %vm432, %v882, %v881
    %v884 = vperm.slane %v661, %v434
    %v885 = vsel %vm436, %v884, %v883
    %v886 = vperm.slane %v664, %v438
    %v887 = vsel %vm440, %v886, %v885
    %v888 = vperm.slane %v667, %v442
    %v889 = vsel %vm444, %v888, %v887
    %v890 = vperm.slane %v670, %v446
    %v891 = vsel %vm448, %v890, %v889
    %v892 = vperm.slane %v673, %v450
    %v893 = vsel %vm452, %v892, %v891
    %v894 = vperm.slane %v676, %v424
    %v895 = vperm.slane %v679, %v426
    %v896 = vsel %vm428, %v895, %v894
    %v897 = vperm.slane %v682, %v430
    %v898 = vsel %vm432, %v897, %v896
    %v899 = vperm.slane %v685, %v434
    %v900 = vsel %vm436, %v899, %v898
    %v901 = vperm.slane %v688, %v438
    %v902 = vsel %vm440, %v901, %v900
    %v903 = vperm.slane %v691, %v442
    %v904 = vsel %vm444, %v903, %v902
    %v905 = vperm.slane %v694, %v446
    %v906 = vsel %vm448, %v905, %v904
    %v907 = vperm.slane %v697, %v450
    %v908 = vsel %vm452, %v907, %v906
    %v909 = vperm.slane %v700, %v424
    %v910 = vperm.slane %v703, %v426
    %v911 = vsel %vm428, %v910, %v909
    %v912 = vperm.slane %v706, %v430
    %v913 = vsel %vm432, %v912, %v911
    %v914 = vperm.slane %v709, %v434
    %v915 = vsel %vm436, %v914, %v913
    %v916 = vperm.slane %v712, %v438
    %v917 = vsel %vm440, %v916, %v915
    %v918 = vperm.slane %v715, %v442
    %v919 = vsel %vm444, %v918, %v917
    %v920 = vperm.slane %v718, %v446
    %v921 = vsel %vm448, %v920, %v919
    %v922 = vperm.slane %v721, %v450
    %v923 = vsel %vm452, %v922, %v921
    %v924 = vperm.slane %v724, %v424
    %v925 = vperm.slane %v727, %v426
    %v926 = vsel %vm428, %v925, %v924
    %v927 = vperm.slane %v730, %v430
    %v928 = vsel %vm432, %v927, %v926
    %v929 = vperm.slane %v733, %v434
    %v930 = vsel %vm436, %v929, %v928
    %v931 = vperm.slane %v736, %v438
    %v932 = vsel %vm440, %v931, %v930
    %v933 = vperm.slane %v739, %v442
    %v934 = vsel %vm444, %v933, %v932
    %v935 = vperm.slane %v742, %v446
    %v936 = vsel %vm448, %v935, %v934
    %v937 = vperm.slane %v745, %v450
    %v938 = vsel %vm452, %v937, %v936
    %v939 = vperm.slane %v748, %v424
    %v940 = vperm.slane %v751, %v426
    %v941 = vsel %vm428, %v940, %v939
    %v942 = vperm.slane %v754, %v430
    %v943 = vsel %vm432, %v942, %v941
    %v944 = vperm.slane %v757, %v434
    %v945 = vsel %vm436, %v944, %v943
    %v946 = vperm.slane %v760, %v438
    %v947 = vsel %vm440, %v946, %v945
    %v948 = vperm.slane %v763, %v442
    %v949 = vsel %vm444, %v948, %v947
    %v950 = vperm.slane %v766, %v446
    %v951 = vsel %vm448, %v950, %v949
    %v952 = vperm.slane %v769, %v450
    %v953 = vsel %vm452, %v952, %v951
    %v954 = vsel %vm559, %v863, %v848
    %v955 = vsel %vm561, %v878, %v954
    %v956 = vsel %vm563, %v893, %v955
    %v957 = vsel %vm565, %v908, %v956
    %v958 = vsel %vm567, %v923, %v957
    %v959 = vsel %vm569, %v938, %v958
    %v960 = vsel %vm571, %v953, %v959
    %v962 = vmax.f32 %v577, %v960
    %963 = vst.msk [vmem:[#allocation2 + $0x8] sm:$0xff] %vm575, %v962
    // Predicated region
    $region22: #{tpu_custom_call.1} parent=1 // pred_check
      %p964 = pneg %p31
    $region23: #{tpu_custom_call.1} parent=1 // pred_check_branch
      %966 = sbr.rel (%p964) target = $region25
    $region24: #{tpu_custom_call.1} parent=1 // pred_region
      %v967 = vld [vmem:[#allocation2] sm:$0xff]
      %v968 = vmul.f32 %v967, 0.00390625
      %969 = vst.msk [vmem:[#allocation2] sm:$0xff] %vm575, %v968
      %v970 = vld [vmem:[#allocation2] sm:$0xff]
      %v971 = vld [vmem:[#allocation2 + $0x8] sm:$0xff]
      %v972 = vld [vmem:[%s1] sm:$0xff]
      %v973 = vld [vmem:[%s1 + $0x8] sm:$0xff]
      %v974 = vld [vmem:[%s1 + $0x10] sm:$0xff]
      %v975 = vld [vmem:[%s1 + $0x18] sm:$0xff]
      %v976 = vld [vmem:[%s1 + $0x20] sm:$0xff]
      %v977 = vld [vmem:[%s1 + $0x28] sm:$0xff]
      %v978 = vld [vmem:[%s1 + $0x30] sm:$0xff]
      %v979 = vld [vmem:[%s1 + $0x38] sm:$0xff]
      %v980 = vld [vmem:[%s2] sm:$0xf]
      %v982 = vsel %vm575, %v970, 0
      %v985 = vsel %vm575, %v971, 0
      %987 = vmatpush.msra.mxu0 0.0
      %988 = vmatpush.msra.mxu0 0.0
      %989 = vmatpush.msra.mxu0 0.0
      %990 = vmatpush.msra.mxu0 0.0
      %991 = vmatpush.msra.mxu0 0.0
      %992 = vmatpush.msra.mxu0 0.0
      %993 = vmatpush.msra.mxu0 0.0
      %994 = vmatpush.msra.mxu0 0.0
      %995 = vmatpush.msra.mxu0 %v979
      %996 = vmatpush.msra.mxu0 %v978
      %997 = vmatpush.msra.mxu0 %v977
      %998 = vmatpush.msra.mxu0 %v976
      %999 = vmatpush.msra.mxu0 %v975
      %1000 = vmatpush.msra.mxu0 %v974
      %1001 = vmatpush.msra.mxu0 %v973
      %1002 = vmatpush.msra.mxu0 %v972
      %1003 = vmatmul.f32.gmra.mxu0 %v982
      %v1004 = vpop.f32.mrf.mxu0
      %v1005 = vadd.f32 0.0, %v1004
      %1006 = vmatmul.f32.gmra.mxu0 %v985
      %v1007 = vpop.f32.mrf.mxu0
      %v1008 = vadd.f32 0.0, %v1007
      %1009 = vdwg.mxu0
      %v1010 = vmax.f32 %v1005, 0.0
      %v1011 = vmax.f32 %v1008, 0.0
      %vm1012 = vcmask 31744
      %v1014 = vsel %vm1012, %v1010, 0
      %v1017 = vsel %vm1012, %v1011, 0
      %vm1019 = vcmask 1043456
      %v1021 = vsel %vm1019, %v980, 0
      %1023 = vmatpush.msra.mxu0 0.0
      %1024 = vmatpush.msra.mxu0 0.0
      %1025 = vmatpush.msra.mxu0 0.0
      %1026 = vmatpush.msra.mxu0 0.0
      %1027 = vmatpush.msra.mxu0 0.0
      %1028 = vmatpush.msra.mxu0 0.0
      %1029 = vmatpush.msra.mxu0 0.0
      %1030 = vmatpush.msra.mxu0 0.0
      %1031 = vmatpush.msra.mxu0 0.0
      %1032 = vmatpush.msra.mxu0 0.0
      %1033 = vmatpush.msra.mxu0 0.0
      %1034 = vmatpush.msra.mxu0 0.0
      %1035 = vmatpush.msra.mxu0 0.0
      %1036 = vmatpush.msra.mxu0 0.0
      %1037 = vmatpush.msra.mxu0 0.0
      %1038 = vmatpush.msra.mxu0 %v1021
      %1039 = vmatmul.f32.gmra.mxu0 %v1014
      %v1040 = vpop.f32.mrf.mxu0
      %v1041 = vadd.f32 0.0, %v1040
      %1042 = vmatmul.f32.gmra.mxu0 %v1017
      %v1043 = vpop.f32.mrf.mxu0
      %v1044 = vadd.f32 0.0, %v1043
      %1045 = vdwg.mxu0
      %v1046 = vadd.f32 %v1041, %v1044
      %v1047 = vxor.u32 %v1046, 2147483648
      %v1048 = vmul.f32 %v1047, 1.442695
      %v1049 = vpow.pop %v1048
      %v1050 = vadd.f32 %v1049, 1.0
      %v1051 = vrcp.pop %v1050
      %v1052 = vmul.f32 %v1050, %v1051
      %v1053 = vsub.f32 1.0, %v1052
      %v1054 = vmul.f32 %v1051, %v1053
      %v1055 = vadd.f32 %v1051, %v1054
      %vm1056 = vweird.f32 %v1050
      %vm1057 = vweird.f32 %v1051
      %vm1058 = vmor %vm1056, %vm1057
      %v1059 = vsel %vm1058, %v1051, %v1055
      %v1060 = vand.u32 2147483647, %v1050
      %vm1061 = vcmp.eq.f32.partialorder %v1060, 8.507059e+37
      %v1062 = vand.u32 %v1050, 2147483648
      %v1063 = vor.u32 1.1754944e-38, %v1062
      %v1064 = vsel %vm1061, %v1063, %v1059
      %v1065 = vmul.f32 1.0, %v1064
      %1066 = vst.msk [vmem:[#allocation6] sm:$0xff] %vm575, %v1065
    $region25: #{tpu_custom_call.1} parent=1 // pred_fallthru
      _
    // Predicated region
    $region26: #{tpu_custom_call.1} parent=1 // pred_check
      _
    $region27: #{tpu_custom_call.1} parent=1 // pred_check_branch
      %1068 = sbr.rel (0) target = $region29
    $region28: #{tpu_custom_call.1} parent=1 // pred_region
      %1070 = vsyncadd [#allocation5], 0
      %s1072 = sshll.u32 [#allocation6], 4
      %s1073 = int_to_ptr.vmem [resolvable:$true] %s1072
      %s1074 = sshll.u32 %s3, 4
      %s1075 = int_to_ptr.hbm [resolvable:$true] %s1074
      %1077 = dma.vmem_to_hbm [thread:$0]  %s1073, 128, %s1075, [#allocation5]
    $region29: #{tpu_custom_call.1} parent=1 // pred_fallthru
      _
    // Predicated region
    $region30: #{tpu_custom_call.1} parent=1 // pred_check
      _
    $region31: #{tpu_custom_call.1} parent=1 // pred_check_branch
      %1079 = sbr.rel (0) target = $region33
    $region32: #{tpu_custom_call.1} parent=1 // pred_region
      %1081 = dma.done [#allocation5], 128
    $region33: #{tpu_custom_call.1} parent=1 // pred_fallthru
      _
    %1082 = vsyncpa [#allocation4], 1
    %1083 = vsyncpa [#allocation5], 1

</llo_original>
